<compile_context>
chip_gen: v5e
topology: v5e:2x2
jax: 0.10.0
libtpu: 0.0.40
codegen_flags: <defaults>
</compile_context>

<pallas_src>
import functools

import jax
import jax.numpy as jnp
import numpy as np
from jax.experimental import pallas as pl
from jax.experimental.pallas import tpu as pltpu


def _layernorm(y, gamma, beta, eps=1e-5):
    mu = jnp.mean(y, axis=-1, keepdims=True)
    var = jnp.mean((y - mu) ** 2, axis=-1, keepdims=True)
    return (y - mu) * jax.lax.rsqrt(var + eps) * gamma + beta


def decoder_kernel(x_ref, mask_ref,
                   wqkv_ref, bqkv_ref, wo_ref, bo_ref,
                   g1_ref, be1_ref,
                   w1_ref, b1_ref, w2_ref, b2_ref,
                   g2_ref, be2_ref,
                   o_ref,
                   acc_ref,
                   *, num_heads):
    h = pl.program_id(1)                     # head index (reduction axis)
    Hd = wo_ref.shape[0]                     # head dim
    scale = 1.0 / (Hd ** 0.5)

    x_bf = x_ref[...].astype(jnp.bfloat16)   # (S, D)
    mask = mask_ref[...].astype(jnp.float32)  # (S, S) additive attention mask

    # --- fused per-head Q/K/V projection: (S, D) @ (D, 3*Hd) ----------------
    qkv = jnp.dot(x_bf, wqkv_ref[...],
                  preferred_element_type=jnp.float32) + bqkv_ref[...]
    q = qkv[:, 0 * Hd:1 * Hd] * scale
    k = qkv[:, 1 * Hd:2 * Hd]
    v = qkv[:, 2 * Hd:3 * Hd]

    # --- scaled dot-product attention (no K transpose materialised) ---------
    sc = jax.lax.dot_general(
        q.astype(jnp.bfloat16), k.astype(jnp.bfloat16),
        (((1,), (1,)), ((), ())),
        preferred_element_type=jnp.float32) + mask              # (S, S)
    sc = sc - jnp.max(sc, axis=-1, keepdims=True)
    p = jnp.exp(sc)
    p = p * pl.reciprocal(jnp.sum(p, axis=-1, keepdims=True), approx=True)

    head = jnp.dot(p.astype(jnp.bfloat16), v.astype(jnp.bfloat16),
                   preferred_element_type=jnp.float32)          # (S, Hd)

    # --- accumulate out-projected head into persistent scratch --------------
    @pl.when(h == 0)
    def _():
        acc_ref[...] = jnp.zeros_like(acc_ref)

    acc_ref[...] += jnp.dot(head.astype(jnp.bfloat16), wo_ref[...],
                            preferred_element_type=jnp.float32)  # (S, D)

    # --- finalize on the last head: residual + LN1 + FFN + residual + LN2 ---
    @pl.when(h == num_heads - 1)
    def _():
        x32 = x_ref[...].astype(jnp.float32)
        attn_out = acc_ref[...] + bo_ref[...]
        y = _layernorm(x32 + attn_out, g1_ref[...], be1_ref[...])

        y_bf = y.astype(jnp.bfloat16)
        h1 = jnp.maximum(
            jnp.dot(y_bf, w1_ref[...], preferred_element_type=jnp.float32)
            + b1_ref[...], 0.0)
        ff = jnp.dot(h1.astype(jnp.bfloat16), w2_ref[...],
                     preferred_element_type=jnp.float32) + b2_ref[...]
        z = _layernorm(y + ff, g2_ref[...], be2_ref[...])
        o_ref[...] = z.astype(o_ref.dtype)


def decoder_forward(x, mask, params, *, num_heads):
    B, S, D = x.shape
    H = num_heads
    Hd = D // H
    F = params["w1"].shape[0]
    wdt = jnp.bfloat16

    # ---- pre-arrange weights in the wrapper (free; no in-kernel transposes) ----
    def head_split_t(w):   # (D_out, D_in) -> (H, D_in, Hd); columns of w.T per head
        return w.T.reshape(D, H, Hd).transpose(1, 0, 2)

    wqkv_h = jnp.concatenate(
        [head_split_t(params["wq"]),
         head_split_t(params["wk"]),
         head_split_t(params["wv"])], axis=-1).astype(wdt)          # (H, D, 3*Hd)
    bqkv_h = jnp.concatenate(
        [params["bq"].reshape(H, 1, Hd),
         params["bk"].reshape(H, 1, Hd),
         params["bv"].reshape(H, 1, Hd)], axis=-1).astype(jnp.float32)  # (H, 1, 3*Hd)
    wo_h = params["wo"].T.reshape(H, Hd, D).astype(wdt)             # (H, Hd, D)
    w1_t = params["w1"].T.astype(wdt)                               # (D, F)
    w2_t = params["w2"].T.astype(wdt)                               # (F, D)

    const2d = lambda shp: pl.BlockSpec(shp, lambda b, h: (0, 0))
    per_head = lambda shp: pl.BlockSpec((None,) + shp, lambda b, h: (h, 0, 0))

    in_specs = [
        pl.BlockSpec((None, S, D), lambda b, h: (b, 0, 0)),   # x (per batch slab)
        const2d((S, S)),                                      # mask
        per_head((D, 3 * Hd)),                                # wqkv (per head)
        per_head((1, 3 * Hd)),                                # bqkv (per head)
        per_head((Hd, D)),                                    # wo   (per head)
        const2d((1, D)),                                      # bo
        const2d((1, D)), const2d((1, D)),                     # gamma1, beta1
        const2d((D, F)), const2d((1, F)),                     # w1.T, b1
        const2d((F, D)), const2d((1, D)),                     # w2.T, b2
        const2d((1, D)), const2d((1, D)),                     # gamma2, beta2
    ]

    kernel = functools.partial(decoder_kernel, num_heads=num_heads)
    return pl.pallas_call(
        kernel,
        out_shape=jax.ShapeDtypeStruct((B, S, D), x.dtype),
        grid=(B, H),
        in_specs=in_specs,
        out_specs=pl.BlockSpec((None, S, D), lambda b, h: (b, 0, 0)),
        scratch_shapes=[pltpu.VMEM((S, D), jnp.float32)],
        compiler_params=pltpu.CompilerParams(
            dimension_semantics=("parallel", "arbitrary"),
            vmem_limit_bytes=64 * 1024 * 1024),
    )(x, mask,
      wqkv_h, bqkv_h, wo_h, params["bo"],
      params["g1"], params["be1"],
      w1_t, params["b1"], w2_t, params["b2"],
      params["g2"], params["be2"])


def decoder_reference(x, mask, params, *, num_heads):
    """Pure-JAX (f32) reference mirroring PyTorch eval-mode semantics."""
    B, S, D = x.shape
    Hd = D // num_heads
    q = x @ params["wq"].T + params["bq"]
    k = x @ params["wk"].T + params["bk"]
    v = x @ params["wv"].T + params["bv"]
    q = q.reshape(B, S, num_heads, Hd).transpose(0, 2, 1, 3) / (Hd ** 0.5)
    k = k.reshape(B, S, num_heads, Hd).transpose(0, 2, 1, 3)
    v = v.reshape(B, S, num_heads, Hd).transpose(0, 2, 1, 3)
    sc = jnp.einsum("bhqd,bhkd->bhqk", q, k) + mask
    p = jax.nn.softmax(sc, axis=-1)
    attn = jnp.einsum("bhqk,bhkd->bhqd", p, v).transpose(0, 2, 1, 3).reshape(B, S, D)
    attn = attn @ params["wo"].T + params["bo"]

    def ln(y, g, b):
        mu = jnp.mean(y, -1, keepdims=True)
        var = jnp.mean((y - mu) ** 2, -1, keepdims=True)
        return (y - mu) / jnp.sqrt(var + 1e-5) * g + b

    y = ln(x + attn, params["g1"], params["be1"])
    ff = jnp.maximum(y @ params["w1"].T + params["b1"], 0.0) @ params["w2"].T + params["b2"]
    return ln(y + ff, params["g2"], params["be2"])


def init_params(key, d_model, ff_layers):
    ks = jax.random.split(key, 8)
    s = 0.05
    return {
        "wq": jax.random.normal(ks[0], (d_model, d_model), jnp.float32) * s,
        "wk": jax.random.normal(ks[1], (d_model, d_model), jnp.float32) * s,
        "wv": jax.random.normal(ks[2], (d_model, d_model), jnp.float32) * s,
        "bq": jax.random.normal(ks[3], (1, d_model), jnp.float32) * s,
        "bk": jnp.zeros((1, d_model), jnp.float32),
        "bv": jnp.zeros((1, d_model), jnp.float32),
        "wo": jax.random.normal(ks[4], (d_model, d_model), jnp.float32) * s,
        "bo": jnp.zeros((1, d_model), jnp.float32),
        "g1": jnp.ones((1, d_model), jnp.float32),
        "be1": jnp.zeros((1, d_model), jnp.float32),
        "w1": jax.random.normal(ks[5], (ff_layers, d_model), jnp.float32) * s,
        "b1": jax.random.normal(ks[6], (1, ff_layers), jnp.float32) * s,
        "w2": jax.random.normal(ks[7], (d_model, ff_layers), jnp.float32) * s,
        "b2": jnp.zeros((1, d_model), jnp.float32),
        "g2": jnp.ones((1, d_model), jnp.float32),
        "be2": jnp.zeros((1, d_model), jnp.float32),
    }


if __name__ == "__main__":
    B, S, d_model, ff_layers, num_heads = 2, 8, 32, 64, 4

    key = jax.random.PRNGKey(0)
    kx, kp = jax.random.split(key)
    x = jax.random.normal(kx, (B, S, d_model), jnp.float32)
    params = init_params(kp, d_model, ff_layers)

    # additive causal attention mask (float attn_mask in PyTorch is additive)
    mask = jnp.where(
        jnp.arange(S)[:, None] >= jnp.arange(S)[None, :], 0.0, -1e9
    ).astype(jnp.float32)

    out = jax.block_until_ready(decoder_forward(x, mask, params, num_heads=num_heads))

    ref = decoder_reference(x, mask, params, num_heads=num_heads)
    # Tolerance reflects bf16 matmul operands (f32 accumulation) + approx reciprocal.
    np.testing.assert_allclose(np.asarray(out), np.asarray(ref), atol=2e-2, rtol=2e-2)

    print("KERNEL_OK")
</pallas_src>

<mosaic_0001>
module attributes {stable_mosaic.version = 11 : i64} {
  func.func @decoder_kernel(%arg0: i32, %arg1: i32, %arg2: memref<1x8x32xf32, #tpu.memory_space<vmem>>, %arg3: memref<8x8xf32, #tpu.memory_space<vmem>>, %arg4: memref<1x32x24xbf16, #tpu.memory_space<vmem>>, %arg5: memref<1x1x24xf32, #tpu.memory_space<vmem>>, %arg6: memref<1x8x32xbf16, #tpu.memory_space<vmem>>, %arg7: memref<1x32xf32, #tpu.memory_space<vmem>>, %arg8: memref<1x32xf32, #tpu.memory_space<vmem>>, %arg9: memref<1x32xf32, #tpu.memory_space<vmem>>, %arg10: memref<32x64xbf16, #tpu.memory_space<vmem>>, %arg11: memref<1x64xf32, #tpu.memory_space<vmem>>, %arg12: memref<64x32xbf16, #tpu.memory_space<vmem>>, %arg13: memref<1x32xf32, #tpu.memory_space<vmem>>, %arg14: memref<1x32xf32, #tpu.memory_space<vmem>>, %arg15: memref<1x32xf32, #tpu.memory_space<vmem>>, %arg16: memref<1x8x32xf32, #tpu.memory_space<vmem>>, %arg17: memref<8x32xf32, #tpu.memory_space<vmem>>) attributes {dimension_semantics = [#tpu.dimension_semantics<parallel>, #tpu.dimension_semantics<arbitrary>], iteration_bounds = array<i64: 2, 4>, scalar_prefetch = 0 : i64, scratch_operands = 1 : i64, tpu.core_type = #tpu.core_type<tc>, window_params = [{transform_indices = @transform_0, window_bounds = array<i64: 1, 8, 32>}, {pipeline_mode = #tpu.pipeline_mode<synchronous>, transform_indices = @transform_1, window_bounds = array<i64: 8, 8>}, {transform_indices = @transform_2, window_bounds = array<i64: 1, 32, 24>}, {transform_indices = @transform_3, window_bounds = array<i64: 1, 1, 24>}, {transform_indices = @transform_4, window_bounds = array<i64: 1, 8, 32>}, {pipeline_mode = #tpu.pipeline_mode<synchronous>, transform_indices = @transform_5, window_bounds = array<i64: 1, 32>}, {pipeline_mode = #tpu.pipeline_mode<synchronous>, transform_indices = @transform_6, window_bounds = array<i64: 1, 32>}, {pipeline_mode = #tpu.pipeline_mode<synchronous>, transform_indices = @transform_7, window_bounds = array<i64: 1, 32>}, {pipeline_mode = #tpu.pipeline_mode<synchronous>, transform_indices = @transform_8, window_bounds = array<i64: 32, 64>}, {pipeline_mode = #tpu.pipeline_mode<synchronous>, transform_indices = @transform_9, window_bounds = array<i64: 1, 64>}, {pipeline_mode = #tpu.pipeline_mode<synchronous>, transform_indices = @transform_10, window_bounds = array<i64: 64, 32>}, {pipeline_mode = #tpu.pipeline_mode<synchronous>, transform_indices = @transform_11, window_bounds = array<i64: 1, 32>}, {pipeline_mode = #tpu.pipeline_mode<synchronous>, transform_indices = @transform_12, window_bounds = array<i64: 1, 32>}, {pipeline_mode = #tpu.pipeline_mode<synchronous>, transform_indices = @transform_13, window_bounds = array<i64: 1, 32>}, {transform_indices = @transform_14, window_bounds = array<i64: 1, 8, 32>}]} {
    %c0 = arith.constant 0 : index
    %c0_0 = arith.constant 0 : index
    %c0_1 = arith.constant 0 : index
    %0 = vector.load %arg2[%c0, %c0_0, %c0_1] : memref<1x8x32xf32, #tpu.memory_space<vmem>>, vector<1x8x32xf32>
    %1 = vector.shape_cast %0 : vector<1x8x32xf32> to vector<8x32xf32>
    %2 = arith.truncf %1 : vector<8x32xf32> to vector<8x32xbf16>
    %c0_2 = arith.constant 0 : index
    %c0_3 = arith.constant 0 : index
    %3 = vector.load %arg3[%c0_2, %c0_3] : memref<8x8xf32, #tpu.memory_space<vmem>>, vector<8x8xf32>
    %c0_4 = arith.constant 0 : index
    %c0_5 = arith.constant 0 : index
    %c0_6 = arith.constant 0 : index
    %4 = vector.load %arg4[%c0_4, %c0_5, %c0_6] : memref<1x32x24xbf16, #tpu.memory_space<vmem>>, vector<1x32x24xbf16>
    %5 = vector.shape_cast %4 : vector<1x32x24xbf16> to vector<32x24xbf16>
    %cst = arith.constant dense<0.000000e+00> : vector<8x24xf32>
    %6 = tpu.matmul %2, %5, %cst {dimension_numbers = #tpu.dot_dimension_numbers<[1], [0], [0], [1], [0, 0, 1, 1], [], []>} : vector<8x32xbf16>, vector<32x24xbf16>, vector<8x24xf32> -> vector<8x24xf32>
    %c0_7 = arith.constant 0 : index
    %c0_8 = arith.constant 0 : index
    %c0_9 = arith.constant 0 : index
    %7 = vector.load %arg5[%c0_7, %c0_8, %c0_9] : memref<1x1x24xf32, #tpu.memory_space<vmem>>, vector<1x1x24xf32>
    %8 = vector.shape_cast %7 : vector<1x1x24xf32> to vector<1x24xf32>
    %9 = vector.broadcast %8 : vector<1x24xf32> to vector<8x24xf32>
    %10 = arith.addf %6, %9 : vector<8x24xf32>
    %11 = vector.extract_strided_slice %10 {offsets = [0, 0], sizes = [8, 8], strides = [1, 1]} : vector<8x24xf32> to vector<8x8xf32>
    %cst_10 = arith.constant 0.353553385 : f32
    %12 = vector.broadcast %cst_10 : f32 to vector<8x8xf32>
    %13 = arith.mulf %11, %12 : vector<8x8xf32>
    %14 = vector.extract_strided_slice %10 {offsets = [0, 8], sizes = [8, 8], strides = [1, 1]} : vector<8x24xf32> to vector<8x8xf32>
    %15 = vector.extract_strided_slice %10 {offsets = [0, 16], sizes = [8, 8], strides = [1, 1]} : vector<8x24xf32> to vector<8x8xf32>
    %16 = arith.truncf %13 : vector<8x8xf32> to vector<8x8xbf16>
    %17 = arith.truncf %14 : vector<8x8xf32> to vector<8x8xbf16>
    %cst_11 = arith.constant dense<0.000000e+00> : vector<8x8xf32>
    %18 = tpu.matmul %16, %17, %cst_11 {dimension_numbers = #tpu.dot_dimension_numbers<[1], [1], [0], [0], [0, 0, 1, 0], [], []>} : vector<8x8xbf16>, vector<8x8xbf16>, vector<8x8xf32> -> vector<8x8xf32>
    %19 = arith.addf %18, %3 : vector<8x8xf32>
    %cst_12 = arith.constant dense<0xFF800000> : vector<8xf32>
    %20 = vector.multi_reduction <maximumf>, %19, %cst_12 [1] : vector<8x8xf32> to vector<8xf32>
    %21 = vector.shape_cast %20 : vector<8xf32> to vector<8x1xf32>
    %22 = vector.broadcast %21 : vector<8x1xf32> to vector<8x8xf32>
    %23 = arith.subf %19, %22 : vector<8x8xf32>
    %24 = math.exp %23 : vector<8x8xf32>
    %cst_13 = arith.constant dense<0.000000e+00> : vector<8xf32>
    %25 = vector.multi_reduction <add>, %24, %cst_13 [1] : vector<8x8xf32> to vector<8xf32>
    %26 = vector.shape_cast %25 : vector<8xf32> to vector<8x1xf32>
    %27 = tpu.reciprocal %26 {approx = true} : vector<8x1xf32> -> vector<8x1xf32>
    %28 = vector.broadcast %27 : vector<8x1xf32> to vector<8x8xf32>
    %29 = arith.mulf %24, %28 : vector<8x8xf32>
    %30 = arith.truncf %29 : vector<8x8xf32> to vector<8x8xbf16>
    %31 = arith.truncf %15 : vector<8x8xf32> to vector<8x8xbf16>
    %cst_14 = arith.constant dense<0.000000e+00> : vector<8x8xf32>
    %32 = tpu.matmul %30, %31, %cst_14 {dimension_numbers = #tpu.dot_dimension_numbers<[1], [0], [0], [1], [0, 0, 1, 1], [], []>} : vector<8x8xbf16>, vector<8x8xbf16>, vector<8x8xf32> -> vector<8x8xf32>
    %c0_i32 = arith.constant 0 : i32
    %33 = arith.cmpi eq, %arg1, %c0_i32 : i32
    %34 = arith.extui %33 : i1 to i32
    %c0_i32_15 = arith.constant 0 : i32
    %35 = arith.cmpi ne, %34, %c0_i32_15 : i32
    scf.if %35 {
      %cst_25 = arith.constant 0.000000e+00 : f32
      %46 = vector.broadcast %cst_25 : f32 to vector<8x32xf32>
      %c0_26 = arith.constant 0 : index
      %c0_27 = arith.constant 0 : index
      %47 = vector.load %arg17[%c0_26, %c0_27] : memref<8x32xf32, #tpu.memory_space<vmem>>, vector<8x32xf32>
      tpu.vector_store %arg17[%c0_26, %c0_27], %46 {strides = array<i32>} : memref<8x32xf32, #tpu.memory_space<vmem>>, vector<8x32xf32>,
    } else {
    }
    %c0_16 = arith.constant 0 : index
    %c0_17 = arith.constant 0 : index
    %36 = vector.load %arg17[%c0_16, %c0_17] : memref<8x32xf32, #tpu.memory_space<vmem>>, vector<8x32xf32>
    %37 = arith.truncf %32 : vector<8x8xf32> to vector<8x8xbf16>
    %c0_18 = arith.constant 0 : index
    %c0_19 = arith.constant 0 : index
    %c0_20 = arith.constant 0 : index
    %38 = vector.load %arg6[%c0_18, %c0_19, %c0_20] : memref<1x8x32xbf16, #tpu.memory_space<vmem>>, vector<1x8x32xbf16>
    %39 = vector.shape_cast %38 : vector<1x8x32xbf16> to vector<8x32xbf16>
    %cst_21 = arith.constant dense<0.000000e+00> : vector<8x32xf32>
    %40 = tpu.matmul %37, %39, %cst_21 {dimension_numbers = #tpu.dot_dimension_numbers<[1], [0], [0], [1], [0, 0, 1, 1], [], []>} : vector<8x8xbf16>, vector<8x32xbf16>, vector<8x32xf32> -> vector<8x32xf32>
    %41 = arith.addf %36, %40 : vector<8x32xf32>
    %c0_22 = arith.constant 0 : index
    %c0_23 = arith.constant 0 : index
    %42 = vector.load %arg17[%c0_22, %c0_23] : memref<8x32xf32, #tpu.memory_space<vmem>>, vector<8x32xf32>
    tpu.vector_store %arg17[%c0_22, %c0_23], %41 {strides = array<i32>} : memref<8x32xf32, #tpu.memory_space<vmem>>, vector<8x32xf32>,
    %c3_i32 = arith.constant 3 : i32
    %43 = arith.cmpi eq, %arg1, %c3_i32 : i32
    %44 = arith.extui %43 : i1 to i32
    %c0_i32_24 = arith.constant 0 : i32
    %45 = arith.cmpi ne, %44, %c0_i32_24 : i32
    scf.if %45 {
      %c0_25 = arith.constant 0 : index
      %c0_26 = arith.constant 0 : index
      %c0_27 = arith.constant 0 : index
      %46 = vector.load %arg2[%c0_25, %c0_26, %c0_27] : memref<1x8x32xf32, #tpu.memory_space<vmem>>, vector<1x8x32xf32>
      %47 = vector.shape_cast %46 : vector<1x8x32xf32> to vector<8x32xf32>
      %c0_28 = arith.constant 0 : index
      %c0_29 = arith.constant 0 : index
      %48 = vector.load %arg17[%c0_28, %c0_29] : memref<8x32xf32, #tpu.memory_space<vmem>>, vector<8x32xf32>
      %c0_30 = arith.constant 0 : index
      %c0_31 = arith.constant 0 : index
      %49 = vector.load %arg7[%c0_30, %c0_31] : memref<1x32xf32, #tpu.memory_space<vmem>>, vector<1x32xf32>
      %50 = vector.broadcast %49 : vector<1x32xf32> to vector<8x32xf32>
      %51 = arith.addf %48, %50 : vector<8x32xf32>
      %52 = arith.addf %47, %51 : vector<8x32xf32>
      %c0_32 = arith.constant 0 : index
      %c0_33 = arith.constant 0 : index
      %53 = vector.load %arg8[%c0_32, %c0_33] : memref<1x32xf32, #tpu.memory_space<vmem>>, vector<1x32xf32>
      %c0_34 = arith.constant 0 : index
      %c0_35 = arith.constant 0 : index
      %54 = vector.load %arg9[%c0_34, %c0_35] : memref<1x32xf32, #tpu.memory_space<vmem>>, vector<1x32xf32>
      %cst_36 = arith.constant dense<0.000000e+00> : vector<8xf32>
      %55 = vector.multi_reduction <add>, %52, %cst_36 [1] : vector<8x32xf32> to vector<8xf32>
      %56 = vector.shape_cast %55 : vector<8xf32> to vector<8x1xf32>
      %cst_37 = arith.constant 3.200000e+01 : f32
      %57 = vector.broadcast %cst_37 : f32 to vector<8x1xf32>
      %58 = arith.divf %56, %57 : vector<8x1xf32>
      %59 = vector.broadcast %58 : vector<8x1xf32> to vector<8x32xf32>
      %60 = arith.subf %52, %59 : vector<8x32xf32>
      %61 = arith.mulf %60, %60 : vector<8x32xf32>
      %cst_38 = arith.constant dense<0.000000e+00> : vector<8xf32>
      %62 = vector.multi_reduction <add>, %61, %cst_38 [1] : vector<8x32xf32> to vector<8xf32>
      %63 = vector.shape_cast %62 : vector<8xf32> to vector<8x1xf32>
      %cst_39 = arith.constant 3.200000e+01 : f32
      %64 = vector.broadcast %cst_39 : f32 to vector<8x1xf32>
      %65 = arith.divf %63, %64 : vector<8x1xf32>
      %66 = vector.broadcast %58 : vector<8x1xf32> to vector<8x32xf32>
      %67 = arith.subf %52, %66 : vector<8x32xf32>
      %cst_40 = arith.constant 9.99999974E-6 : f32
      %68 = vector.broadcast %cst_40 : f32 to vector<8x1xf32>
      %69 = arith.addf %65, %68 : vector<8x1xf32>
      %70 = math.rsqrt %69 : vector<8x1xf32>
      %71 = vector.broadcast %70 : vector<8x1xf32> to vector<8x32xf32>
      %72 = arith.mulf %67, %71 : vector<8x32xf32>
      %73 = vector.broadcast %53 : vector<1x32xf32> to vector<8x32xf32>
      %74 = arith.mulf %72, %73 : vector<8x32xf32>
      %75 = vector.broadcast %54 : vector<1x32xf32> to vector<8x32xf32>
      %76 = arith.addf %74, %75 : vector<8x32xf32>
      %77 = arith.truncf %76 : vector<8x32xf32> to vector<8x32xbf16>
      %c0_41 = arith.constant 0 : index
      %c0_42 = arith.constant 0 : index
      %78 = vector.load %arg10[%c0_41, %c0_42] : memref<32x64xbf16, #tpu.memory_space<vmem>>, vector<32x64xbf16>
      %cst_43 = arith.constant dense<0.000000e+00> : vector<8x64xf32>
      %79 = tpu.matmul %77, %78, %cst_43 {dimension_numbers = #tpu.dot_dimension_numbers<[1], [0], [0], [1], [0, 0, 1, 1], [], []>} : vector<8x32xbf16>, vector<32x64xbf16>, vector<8x64xf32> -> vector<8x64xf32>
      %c0_44 = arith.constant 0 : index
      %c0_45 = arith.constant 0 : index
      %80 = vector.load %arg11[%c0_44, %c0_45] : memref<1x64xf32, #tpu.memory_space<vmem>>, vector<1x64xf32>
      %81 = vector.broadcast %80 : vector<1x64xf32> to vector<8x64xf32>
      %82 = arith.addf %79, %81 : vector<8x64xf32>
      %cst_46 = arith.constant 0.000000e+00 : f32
      %83 = vector.broadcast %cst_46 : f32 to vector<8x64xf32>
      %84 = arith.maximumf %82, %83 : vector<8x64xf32>
      %85 = arith.truncf %84 : vector<8x64xf32> to vector<8x64xbf16>
      %c0_47 = arith.constant 0 : index
      %c0_48 = arith.constant 0 : index
      %86 = vector.load %arg12[%c0_47, %c0_48] : memref<64x32xbf16, #tpu.memory_space<vmem>>, vector<64x32xbf16>
      %cst_49 = arith.constant dense<0.000000e+00> : vector<8x32xf32>
      %87 = tpu.matmul %85, %86, %cst_49 {dimension_numbers = #tpu.dot_dimension_numbers<[1], [0], [0], [1], [0, 0, 1, 1], [], []>} : vector<8x64xbf16>, vector<64x32xbf16>, vector<8x32xf32> -> vector<8x32xf32>
      %c0_50 = arith.constant 0 : index
      %c0_51 = arith.constant 0 : index
      %88 = vector.load %arg13[%c0_50, %c0_51] : memref<1x32xf32, #tpu.memory_space<vmem>>, vector<1x32xf32>
      %89 = vector.broadcast %88 : vector<1x32xf32> to vector<8x32xf32>
      %90 = arith.addf %87, %89 : vector<8x32xf32>
      %91 = arith.addf %76, %90 : vector<8x32xf32>
      %c0_52 = arith.constant 0 : index
      %c0_53 = arith.constant 0 : index
      %92 = vector.load %arg14[%c0_52, %c0_53] : memref<1x32xf32, #tpu.memory_space<vmem>>, vector<1x32xf32>
      %c0_54 = arith.constant 0 : index
      %c0_55 = arith.constant 0 : index
      %93 = vector.load %arg15[%c0_54, %c0_55] : memref<1x32xf32, #tpu.memory_space<vmem>>, vector<1x32xf32>
      %cst_56 = arith.constant dense<0.000000e+00> : vector<8xf32>
      %94 = vector.multi_reduction <add>, %91, %cst_56 [1] : vector<8x32xf32> to vector<8xf32>
      %95 = vector.shape_cast %94 : vector<8xf32> to vector<8x1xf32>
      %cst_57 = arith.constant 3.200000e+01 : f32
      %96 = vector.broadcast %cst_57 : f32 to vector<8x1xf32>
      %97 = arith.divf %95, %96 : vector<8x1xf32>
      %98 = vector.broadcast %97 : vector<8x1xf32> to vector<8x32xf32>
      %99 = arith.subf %91, %98 : vector<8x32xf32>
      %100 = arith.mulf %99, %99 : vector<8x32xf32>
      %cst_58 = arith.constant dense<0.000000e+00> : vector<8xf32>
      %101 = vector.multi_reduction <add>, %100, %cst_58 [1] : vector<8x32xf32> to vector<8xf32>
      %102 = vector.shape_cast %101 : vector<8xf32> to vector<8x1xf32>
      %cst_59 = arith.constant 3.200000e+01 : f32
      %103 = vector.broadcast %cst_59 : f32 to vector<8x1xf32>
      %104 = arith.divf %102, %103 : vector<8x1xf32>
      %105 = vector.broadcast %97 : vector<8x1xf32> to vector<8x32xf32>
      %106 = arith.subf %91, %105 : vector<8x32xf32>
      %cst_60 = arith.constant 9.99999974E-6 : f32
      %107 = vector.broadcast %cst_60 : f32 to vector<8x1xf32>
      %108 = arith.addf %104, %107 : vector<8x1xf32>
      %109 = math.rsqrt %108 : vector<8x1xf32>
      %110 = vector.broadcast %109 : vector<8x1xf32> to vector<8x32xf32>
      %111 = arith.mulf %106, %110 : vector<8x32xf32>
      %112 = vector.broadcast %92 : vector<1x32xf32> to vector<8x32xf32>
      %113 = arith.mulf %111, %112 : vector<8x32xf32>
      %114 = vector.broadcast %93 : vector<1x32xf32> to vector<8x32xf32>
      %115 = arith.addf %113, %114 : vector<8x32xf32>
      %c0_61 = arith.constant 0 : index
      %c0_62 = arith.constant 0 : index
      %c0_63 = arith.constant 0 : index
      %116 = vector.load %arg16[%c0_61, %c0_62, %c0_63] : memref<1x8x32xf32, #tpu.memory_space<vmem>>, vector<1x8x32xf32>
      %117 = vector.shape_cast %116 : vector<1x8x32xf32> to vector<8x32xf32>
      %118 = vector.shape_cast %115 : vector<8x32xf32> to vector<1x8x32xf32>
      tpu.vector_store %arg16[%c0_61, %c0_62, %c0_63], %118 {strides = array<i32>} : memref<1x8x32xf32, #tpu.memory_space<vmem>>, vector<1x8x32xf32>,
    } else {
    }
    return
  }
  func.func @transform_0(%arg0: i32, %arg1: i32) -> (i32, i32, i32) {
    %c0_i32 = arith.constant 0 : i32
    %c0_i32_0 = arith.constant 0 : i32
    %c0_i32_1 = arith.constant 0 : i32
    return %arg0, %c0_i32, %c0_i32_0 : i32, i32, i32
  }
  func.func @transform_1(%arg0: i32, %arg1: i32) -> (i32, i32) {
    %c0_i32 = arith.constant 0 : i32
    %c0_i32_0 = arith.constant 0 : i32
    %c0_i32_1 = arith.constant 0 : i32
    return %c0_i32, %c0_i32_0 : i32, i32
  }
  func.func @transform_2(%arg0: i32, %arg1: i32) -> (i32, i32, i32) {
    %c0_i32 = arith.constant 0 : i32
    %c0_i32_0 = arith.constant 0 : i32
    %c0_i32_1 = arith.constant 0 : i32
    return %arg1, %c0_i32, %c0_i32_0 : i32, i32, i32
  }
  func.func @transform_3(%arg0: i32, %arg1: i32) -> (i32, i32, i32) {
    %c0_i32 = arith.constant 0 : i32
    %c0_i32_0 = arith.constant 0 : i32
    %c0_i32_1 = arith.constant 0 : i32
    return %arg1, %c0_i32, %c0_i32_0 : i32, i32, i32
  }
  func.func @transform_4(%arg0: i32, %arg1: i32) -> (i32, i32, i32) {
    %c0_i32 = arith.constant 0 : i32
    %c0_i32_0 = arith.constant 0 : i32
    %c0_i32_1 = arith.constant 0 : i32
    return %arg1, %c0_i32, %c0_i32_0 : i32, i32, i32
  }
  func.func @transform_5(%arg0: i32, %arg1: i32) -> (i32, i32) {
    %c0_i32 = arith.constant 0 : i32
    %c0_i32_0 = arith.constant 0 : i32
    %c0_i32_1 = arith.constant 0 : i32
    return %c0_i32, %c0_i32_0 : i32, i32
  }
  func.func @transform_6(%arg0: i32, %arg1: i32) -> (i32, i32) {
    %c0_i32 = arith.constant 0 : i32
    %c0_i32_0 = arith.constant 0 : i32
    %c0_i32_1 = arith.constant 0 : i32
    return %c0_i32, %c0_i32_0 : i32, i32
  }
  func.func @transform_7(%arg0: i32, %arg1: i32) -> (i32, i32) {
    %c0_i32 = arith.constant 0 : i32
    %c0_i32_0 = arith.constant 0 : i32
    %c0_i32_1 = arith.constant 0 : i32
    return %c0_i32, %c0_i32_0 : i32, i32
  }
  func.func @transform_8(%arg0: i32, %arg1: i32) -> (i32, i32) {
    %c0_i32 = arith.constant 0 : i32
    %c0_i32_0 = arith.constant 0 : i32
    %c0_i32_1 = arith.constant 0 : i32
    return %c0_i32, %c0_i32_0 : i32, i32
  }
  func.func @transform_9(%arg0: i32, %arg1: i32) -> (i32, i32) {
    %c0_i32 = arith.constant 0 : i32
    %c0_i32_0 = arith.constant 0 : i32
    %c0_i32_1 = arith.constant 0 : i32
    return %c0_i32, %c0_i32_0 : i32, i32
  }
  func.func @transform_10(%arg0: i32, %arg1: i32) -> (i32, i32) {
    %c0_i32 = arith.constant 0 : i32
    %c0_i32_0 = arith.constant 0 : i32
    %c0_i32_1 = arith.constant 0 : i32
    return %c0_i32, %c0_i32_0 : i32, i32
  }
  func.func @transform_11(%arg0: i32, %arg1: i32) -> (i32, i32) {
    %c0_i32 = arith.constant 0 : i32
    %c0_i32_0 = arith.constant 0 : i32
    %c0_i32_1 = arith.constant 0 : i32
    return %c0_i32, %c0_i32_0 : i32, i32
  }
  func.func @transform_12(%arg0: i32, %arg1: i32) -> (i32, i32) {
    %c0_i32 = arith.constant 0 : i32
    %c0_i32_0 = arith.constant 0 : i32
    %c0_i32_1 = arith.constant 0 : i32
    return %c0_i32, %c0_i32_0 : i32, i32
  }
  func.func @transform_13(%arg0: i32, %arg1: i32) -> (i32, i32) {
    %c0_i32 = arith.constant 0 : i32
    %c0_i32_0 = arith.constant 0 : i32
    %c0_i32_1 = arith.constant 0 : i32
    return %c0_i32, %c0_i32_0 : i32, i32
  }
  func.func @transform_14(%arg0: i32, %arg1: i32) -> (i32, i32, i32) {
    %c0_i32 = arith.constant 0 : i32
    %c0_i32_0 = arith.constant 0 : i32
    %c0_i32_1 = arith.constant 0 : i32
    return %arg0, %c0_i32, %c0_i32_0 : i32, i32, i32
  }
}

</mosaic_0001>

<llo_original>
// kernel: tpu_custom_call.1
$region0: #{tpu_custom_call.1}
  #allocation0 [shape = 'u32[]', space=smem, size = 0x4, offset = 0x4, fixed_abs, tag = 'smem constant byte address 0x4 - core index']
  #allocation1 [shape = 'u32[72,128]{1,0:T(1,128)}', space=vmem, size = 0x9000, scoped, tag = 'internal scratch']
  #allocation2 [shape = 'f32[8,32]{1,0:T(8,128)}', space=vmem, size = 0x1000, scoped, tag = 'scratch operand']
  %s0 = inlined_call_operand.vmem [shape: f32[2,8,32], index: 0, kind: input, shape index: {}]
  %s1 = inlined_call_operand.vmem [shape: f32[8,8], index: 1, kind: input, shape index: {}]
  %s2 = inlined_call_operand.vmem [shape: bf16[4,32,24], index: 2, kind: input, shape index: {}]
  %s3 = inlined_call_operand.vmem [shape: f32[4,1,24], index: 3, kind: input, shape index: {}]
  %s4 = inlined_call_operand.vmem [shape: bf16[4,8,32], index: 4, kind: input, shape index: {}]
  %s5 = inlined_call_operand.vmem [shape: f32[1,32], index: 5, kind: input, shape index: {}]
  %s6 = inlined_call_operand.vmem [shape: f32[1,32], index: 6, kind: input, shape index: {}]
  %s7 = inlined_call_operand.vmem [shape: f32[1,32], index: 7, kind: input, shape index: {}]
  %s8 = inlined_call_operand.vmem [shape: bf16[32,64], index: 8, kind: input, shape index: {}]
  %s9 = inlined_call_operand.vmem [shape: f32[1,64], index: 9, kind: input, shape index: {}]
  %s10 = inlined_call_operand.vmem [shape: bf16[64,32], index: 10, kind: input, shape index: {}]
  %s11 = inlined_call_operand.vmem [shape: f32[1,32], index: 11, kind: input, shape index: {}]
  %s12 = inlined_call_operand.vmem [shape: f32[1,32], index: 12, kind: input, shape index: {}]
  %s13 = inlined_call_operand.vmem [shape: f32[1,32], index: 13, kind: input, shape index: {}]
  %s14 = inlined_call_operand.hbm [shape: f32[2,8,32], index: 14, kind: output, shape index: {}]
  %s15 = sld [smem:[#allocation0]]
  $region97: #{tpu_custom_call.1} parent=0
    _
  %s17 = ssub.s32 1, %s15
  %s18 = scalar_select 0, %s17, %s15
  $region1: #{tpu_custom_call.1} parent=0
    #allocation3 [shape = 'u8[8192]{0}', space=vmem, size = 0x2000, scoped, tag = 'output window, operand 0']
    #allocation4 [shape = 's32[2]{0}', space=sflag, size = 0x8, scoped, tag = 'scoped memory for tpu_custom_call.1']
    %19 = vsyncpa [#allocation4], 0
    %s20 = scalar_lea.sflag [#allocation4], 1
    %21 = vsyncpa %s20, 0
    loop: start=0, step=1, limit=10
    $region2: #{tpu_custom_call.1} parent=1 // loop_pre_header
      _
    $region3: #{tpu_custom_call.1} parent=1 // loop_header
      %s23 = sphi 0, %s27
      %p24 = scmp.ge.s32.totalorder %s23, 10
      %s30 = sphi 0, %s42
      %s31 = sphi 0, %s38
      %s32 = sphi 0, %s30
      %s33 = sphi 0, %s31
      %s34 = sphi 0, %s32
      %s35 = sphi 0, %s33
      %s45 = sphi 0, %s47
      %s48 = sphi 0, %s45
      %s49 = sphi 0, %s48
      %s65 = sphi 0, %s49
      %s69 = sphi 0, %s69
      %s71 = sphi 0, %s69
      %s72 = sphi 0, %s71
      %s86 = sphi 0, %s72
      %s92 = sphi 0, %s94
      %s95 = sphi 0, %s92
      %s96 = sphi 0, %s95
      %s112 = sphi 0, %s96
      %s118 = sphi 0, %s120
      %s121 = sphi 0, %s118
      %s122 = sphi 0, %s121
      %s138 = sphi 0, %s122
      %s144 = sphi 0, %s146
      %s147 = sphi 0, %s144
      %s148 = sphi 0, %s147
      %s164 = sphi 0, %s148
      %s168 = sphi 0, %s168
      %s170 = sphi 0, %s168
      %s171 = sphi 0, %s170
      %s185 = sphi 0, %s171
      %s189 = sphi 0, %s189
      %s191 = sphi 0, %s189
      %s192 = sphi 0, %s191
      %s206 = sphi 0, %s192
      %s210 = sphi 0, %s210
      %s212 = sphi 0, %s210
      %s213 = sphi 0, %s212
      %s227 = sphi 0, %s213
      %s231 = sphi 0, %s231
      %s233 = sphi 0, %s231
      %s234 = sphi 0, %s233
      %s248 = sphi 0, %s234
      %s252 = sphi 0, %s252
      %s254 = sphi 0, %s252
      %s255 = sphi 0, %s254
      %s269 = sphi 0, %s255
      %s273 = sphi 0, %s273
      %s275 = sphi 0, %s273
      %s276 = sphi 0, %s275
      %s290 = sphi 0, %s276
      %s294 = sphi 0, %s294
      %s296 = sphi 0, %s294
      %s297 = sphi 0, %s296
      %s311 = sphi 0, %s297
      %s315 = sphi 0, %s315
      %s317 = sphi 0, %s315
      %s318 = sphi 0, %s317
      %s332 = sphi 0, %s318
      %s336 = sphi 0, %s336
      %s338 = sphi 0, %s336
      %s339 = sphi 0, %s338
      %s353 = sphi 0, %s339
      %s359 = sphi 0, %s361
      %s362 = sphi 0, %s359
      %s363 = sphi 0, %s362
      %s379 = sphi 0, %s363
    $region4: #{tpu_custom_call.1} parent=1 // loop_header_branch
      %26 = sbr.rel (%p24) target = $region8
    $region5: #{tpu_custom_call.1} parent=1 // loop_body
      %s28 = ssub.s32 %s23, 1
      %s29 = ssub.s32 %s23, 2
      %s36 = sadd.s32 1, %s31
      %p37 = scmp.ge.s32.totalorder %s36, 4
      %s38 = scalar_select %p37, 0, %s36
      %s39 = sadd.s32 1, %s30
      %s40 = scalar_select %p37, %s39, %s30
      %p41 = scmp.ge.s32.totalorder %s40, 2
      %s42 = scalar_select %p41, 0, %s40
      %s43 = ssub.s32 %s30, %s42
      %p44 = scmp.eq.s32.totalorder %s43, 0
      %s46 = sadd.s32 %s45, 1
      %s47 = scalar_select %p44, %s45, %s46
      %p50 = pneg %p44
      %p51 = scmp.eq.s32.totalorder %s23, 7
      %p52 = por %p50, %p51
      %p53 = scmp.ne.s32.totalorder %s45, %s48
      %p54 = scmp.eq.s32.totalorder %s23, 0
      %p55 = por %p53, %p54
      %p56 = scmp.ne.s32.totalorder %s45, %s48
      %p57 = scmp.eq.s32.totalorder %s28, 7
      %p58 = por %p56, %p57
      %p59 = scmp.ne.s32.totalorder %s48, %s49
      %p60 = scmp.eq.s32.totalorder %s28, 0
      %p61 = por %p59, %p60
      %p62 = scmp.ne.s32.totalorder %s48, %s49
      %p63 = scmp.eq.s32.totalorder %s29, 7
      %p64 = por %p62, %p63
      %p66 = scmp.ne.s32.totalorder %s49, %s65
      %p67 = scmp.eq.s32.totalorder %s29, 0
      %p68 = por %p66, %p67
      %s70 = sadd.s32 %s69, 1
      %p73 = scmp.eq.s32.totalorder %s23, 7
      %p74 = scmp.ne.s32.totalorder %s69, %s71
      %p75 = scmp.eq.s32.totalorder %s23, 0
      %p76 = por %p74, %p75
      %p77 = scmp.ne.s32.totalorder %s69, %s71
      %p78 = scmp.eq.s32.totalorder %s28, 7
      %p79 = por %p77, %p78
      %p80 = scmp.ne.s32.totalorder %s71, %s72
      %p81 = scmp.eq.s32.totalorder %s28, 0
      %p82 = por %p80, %p81
      %p83 = scmp.ne.s32.totalorder %s71, %s72
      %p84 = scmp.eq.s32.totalorder %s29, 7
      %p85 = por %p83, %p84
      %p87 = scmp.ne.s32.totalorder %s72, %s86
      %p88 = scmp.eq.s32.totalorder %s29, 0
      %p89 = por %p87, %p88
      %s90 = ssub.s32 %s31, %s38
      %p91 = scmp.eq.s32.totalorder %s90, 0
      %s93 = sadd.s32 %s92, 1
      %s94 = scalar_select %p91, %s92, %s93
      %p97 = pneg %p91
      %p98 = scmp.eq.s32.totalorder %s23, 7
      %p99 = por %p97, %p98
      %p100 = scmp.ne.s32.totalorder %s92, %s95
      %p101 = scmp.eq.s32.totalorder %s23, 0
      %p102 = por %p100, %p101
      %p103 = scmp.ne.s32.totalorder %s92, %s95
      %p104 = scmp.eq.s32.totalorder %s28, 7
      %p105 = por %p103, %p104
      %p106 = scmp.ne.s32.totalorder %s95, %s96
      %p107 = scmp.eq.s32.totalorder %s28, 0
      %p108 = por %p106, %p107
      %p109 = scmp.ne.s32.totalorder %s95, %s96
      %p110 = scmp.eq.s32.totalorder %s29, 7
      %p111 = por %p109, %p110
      %p113 = scmp.ne.s32.totalorder %s96, %s112
      %p114 = scmp.eq.s32.totalorder %s29, 0
      %p115 = por %p113, %p114
      %s116 = ssub.s32 %s31, %s38
      %p117 = scmp.eq.s32.totalorder %s116, 0
      %s119 = sadd.s32 %s118, 1
      %s120 = scalar_select %p117, %s118, %s119
      %p123 = pneg %p117
      %p124 = scmp.eq.s32.totalorder %s23, 7
      %p125 = por %p123, %p124
      %p126 = scmp.ne.s32.totalorder %s118, %s121
      %p127 = scmp.eq.s32.totalorder %s23, 0
      %p128 = por %p126, %p127
      %p129 = scmp.ne.s32.totalorder %s118, %s121
      %p130 = scmp.eq.s32.totalorder %s28, 7
      %p131 = por %p129, %p130
      %p132 = scmp.ne.s32.totalorder %s121, %s122
      %p133 = scmp.eq.s32.totalorder %s28, 0
      %p134 = por %p132, %p133
      %p135 = scmp.ne.s32.totalorder %s121, %s122
      %p136 = scmp.eq.s32.totalorder %s29, 7
      %p137 = por %p135, %p136
      %p139 = scmp.ne.s32.totalorder %s122, %s138
      %p140 = scmp.eq.s32.totalorder %s29, 0
      %p141 = por %p139, %p140
      %s142 = ssub.s32 %s31, %s38
      %p143 = scmp.eq.s32.totalorder %s142, 0
      %s145 = sadd.s32 %s144, 1
      %s146 = scalar_select %p143, %s144, %s145
      %p149 = pneg %p143
      %p150 = scmp.eq.s32.totalorder %s23, 7
      %p151 = por %p149, %p150
      %p152 = scmp.ne.s32.totalorder %s144, %s147
      %p153 = scmp.eq.s32.totalorder %s23, 0
      %p154 = por %p152, %p153
      %p155 = scmp.ne.s32.totalorder %s144, %s147
      %p156 = scmp.eq.s32.totalorder %s28, 7
      %p157 = por %p155, %p156
      %p158 = scmp.ne.s32.totalorder %s147, %s148
      %p159 = scmp.eq.s32.totalorder %s28, 0
      %p160 = por %p158, %p159
      %p161 = scmp.ne.s32.totalorder %s147, %s148
      %p162 = scmp.eq.s32.totalorder %s29, 7
      %p163 = por %p161, %p162
      %p165 = scmp.ne.s32.totalorder %s148, %s164
      %p166 = scmp.eq.s32.totalorder %s29, 0
      %p167 = por %p165, %p166
      %s169 = sadd.s32 %s168, 1
      %p172 = scmp.eq.s32.totalorder %s23, 7
      %p173 = scmp.ne.s32.totalorder %s168, %s170
      %p174 = scmp.eq.s32.totalorder %s23, 0
      %p175 = por %p173, %p174
      %p176 = scmp.ne.s32.totalorder %s168, %s170
      %p177 = scmp.eq.s32.totalorder %s28, 7
      %p178 = por %p176, %p177
      %p179 = scmp.ne.s32.totalorder %s170, %s171
      %p180 = scmp.eq.s32.totalorder %s28, 0
      %p181 = por %p179, %p180
      %p182 = scmp.ne.s32.totalorder %s170, %s171
      %p183 = scmp.eq.s32.totalorder %s29, 7
      %p184 = por %p182, %p183
      %p186 = scmp.ne.s32.totalorder %s171, %s185
      %p187 = scmp.eq.s32.totalorder %s29, 0
      %p188 = por %p186, %p187
      %s190 = sadd.s32 %s189, 1
      %p193 = scmp.eq.s32.totalorder %s23, 7
      %p194 = scmp.ne.s32.totalorder %s189, %s191
      %p195 = scmp.eq.s32.totalorder %s23, 0
      %p196 = por %p194, %p195
      %p197 = scmp.ne.s32.totalorder %s189, %s191
      %p198 = scmp.eq.s32.totalorder %s28, 7
      %p199 = por %p197, %p198
      %p200 = scmp.ne.s32.totalorder %s191, %s192
      %p201 = scmp.eq.s32.totalorder %s28, 0
      %p202 = por %p200, %p201
      %p203 = scmp.ne.s32.totalorder %s191, %s192
      %p204 = scmp.eq.s32.totalorder %s29, 7
      %p205 = por %p203, %p204
      %p207 = scmp.ne.s32.totalorder %s192, %s206
      %p208 = scmp.eq.s32.totalorder %s29, 0
      %p209 = por %p207, %p208
      %s211 = sadd.s32 %s210, 1
      %p214 = scmp.eq.s32.totalorder %s23, 7
      %p215 = scmp.ne.s32.totalorder %s210, %s212
      %p216 = scmp.eq.s32.totalorder %s23, 0
      %p217 = por %p215, %p216
      %p218 = scmp.ne.s32.totalorder %s210, %s212
      %p219 = scmp.eq.s32.totalorder %s28, 7
      %p220 = por %p218, %p219
      %p221 = scmp.ne.s32.totalorder %s212, %s213
      %p222 = scmp.eq.s32.totalorder %s28, 0
      %p223 = por %p221, %p222
      %p224 = scmp.ne.s32.totalorder %s212, %s213
      %p225 = scmp.eq.s32.totalorder %s29, 7
      %p226 = por %p224, %p225
      %p228 = scmp.ne.s32.totalorder %s213, %s227
      %p229 = scmp.eq.s32.totalorder %s29, 0
      %p230 = por %p228, %p229
      %s232 = sadd.s32 %s231, 1
      %p235 = scmp.eq.s32.totalorder %s23, 7
      %p236 = scmp.ne.s32.totalorder %s231, %s233
      %p237 = scmp.eq.s32.totalorder %s23, 0
      %p238 = por %p236, %p237
      %p239 = scmp.ne.s32.totalorder %s231, %s233
      %p240 = scmp.eq.s32.totalorder %s28, 7
      %p241 = por %p239, %p240
      %p242 = scmp.ne.s32.totalorder %s233, %s234
      %p243 = scmp.eq.s32.totalorder %s28, 0
      %p244 = por %p242, %p243
      %p245 = scmp.ne.s32.totalorder %s233, %s234
      %p246 = scmp.eq.s32.totalorder %s29, 7
      %p247 = por %p245, %p246
      %p249 = scmp.ne.s32.totalorder %s234, %s248
      %p250 = scmp.eq.s32.totalorder %s29, 0
      %p251 = por %p249, %p250
      %s253 = sadd.s32 %s252, 1
      %p256 = scmp.eq.s32.totalorder %s23, 7
      %p257 = scmp.ne.s32.totalorder %s252, %s254
      %p258 = scmp.eq.s32.totalorder %s23, 0
      %p259 = por %p257, %p258
      %p260 = scmp.ne.s32.totalorder %s252, %s254
      %p261 = scmp.eq.s32.totalorder %s28, 7
      %p262 = por %p260, %p261
      %p263 = scmp.ne.s32.totalorder %s254, %s255
      %p264 = scmp.eq.s32.totalorder %s28, 0
      %p265 = por %p263, %p264
      %p266 = scmp.ne.s32.totalorder %s254, %s255
      %p267 = scmp.eq.s32.totalorder %s29, 7
      %p268 = por %p266, %p267
      %p270 = scmp.ne.s32.totalorder %s255, %s269
      %p271 = scmp.eq.s32.totalorder %s29, 0
      %p272 = por %p270, %p271
      %s274 = sadd.s32 %s273, 1
      %p277 = scmp.eq.s32.totalorder %s23, 7
      %p278 = scmp.ne.s32.totalorder %s273, %s275
      %p279 = scmp.eq.s32.totalorder %s23, 0
      %p280 = por %p278, %p279
      %p281 = scmp.ne.s32.totalorder %s273, %s275
      %p282 = scmp.eq.s32.totalorder %s28, 7
      %p283 = por %p281, %p282
      %p284 = scmp.ne.s32.totalorder %s275, %s276
      %p285 = scmp.eq.s32.totalorder %s28, 0
      %p286 = por %p284, %p285
      %p287 = scmp.ne.s32.totalorder %s275, %s276
      %p288 = scmp.eq.s32.totalorder %s29, 7
      %p289 = por %p287, %p288
      %p291 = scmp.ne.s32.totalorder %s276, %s290
      %p292 = scmp.eq.s32.totalorder %s29, 0
      %p293 = por %p291, %p292
      %s295 = sadd.s32 %s294, 1
      %p298 = scmp.eq.s32.totalorder %s23, 7
      %p299 = scmp.ne.s32.totalorder %s294, %s296
      %p300 = scmp.eq.s32.totalorder %s23, 0
      %p301 = por %p299, %p300
      %p302 = scmp.ne.s32.totalorder %s294, %s296
      %p303 = scmp.eq.s32.totalorder %s28, 7
      %p304 = por %p302, %p303
      %p305 = scmp.ne.s32.totalorder %s296, %s297
      %p306 = scmp.eq.s32.totalorder %s28, 0
      %p307 = por %p305, %p306
      %p308 = scmp.ne.s32.totalorder %s296, %s297
      %p309 = scmp.eq.s32.totalorder %s29, 7
      %p310 = por %p308, %p309
      %p312 = scmp.ne.s32.totalorder %s297, %s311
      %p313 = scmp.eq.s32.totalorder %s29, 0
      %p314 = por %p312, %p313
      %s316 = sadd.s32 %s315, 1
      %p319 = scmp.eq.s32.totalorder %s23, 7
      %p320 = scmp.ne.s32.totalorder %s315, %s317
      %p321 = scmp.eq.s32.totalorder %s23, 0
      %p322 = por %p320, %p321
      %p323 = scmp.ne.s32.totalorder %s315, %s317
      %p324 = scmp.eq.s32.totalorder %s28, 7
      %p325 = por %p323, %p324
      %p326 = scmp.ne.s32.totalorder %s317, %s318
      %p327 = scmp.eq.s32.totalorder %s28, 0
      %p328 = por %p326, %p327
      %p329 = scmp.ne.s32.totalorder %s317, %s318
      %p330 = scmp.eq.s32.totalorder %s29, 7
      %p331 = por %p329, %p330
      %p333 = scmp.ne.s32.totalorder %s318, %s332
      %p334 = scmp.eq.s32.totalorder %s29, 0
      %p335 = por %p333, %p334
      %s337 = sadd.s32 %s336, 1
      %p340 = scmp.eq.s32.totalorder %s23, 7
      %p341 = scmp.ne.s32.totalorder %s336, %s338
      %p342 = scmp.eq.s32.totalorder %s23, 0
      %p343 = por %p341, %p342
      %p344 = scmp.ne.s32.totalorder %s336, %s338
      %p345 = scmp.eq.s32.totalorder %s28, 7
      %p346 = por %p344, %p345
      %p347 = scmp.ne.s32.totalorder %s338, %s339
      %p348 = scmp.eq.s32.totalorder %s28, 0
      %p349 = por %p347, %p348
      %p350 = scmp.ne.s32.totalorder %s338, %s339
      %p351 = scmp.eq.s32.totalorder %s29, 7
      %p352 = por %p350, %p351
      %p354 = scmp.ne.s32.totalorder %s339, %s353
      %p355 = scmp.eq.s32.totalorder %s29, 0
      %p356 = por %p354, %p355
      %s357 = ssub.s32 %s30, %s42
      %p358 = scmp.eq.s32.totalorder %s357, 0
      %s360 = sadd.s32 %s359, 1
      %s361 = scalar_select %p358, %s359, %s360
      %p364 = pneg %p358
      %p365 = scmp.eq.s32.totalorder %s23, 7
      %p366 = por %p364, %p365
      %p367 = scmp.ne.s32.totalorder %s359, %s362
      %p368 = scmp.eq.s32.totalorder %s23, 0
      %p369 = por %p367, %p368
      %p370 = scmp.ne.s32.totalorder %s359, %s362
      %p371 = scmp.eq.s32.totalorder %s28, 7
      %p372 = por %p370, %p371
      %p373 = scmp.ne.s32.totalorder %s362, %s363
      %p374 = scmp.eq.s32.totalorder %s28, 0
      %p375 = por %p373, %p374
      %p376 = scmp.ne.s32.totalorder %s362, %s363
      %p377 = scmp.eq.s32.totalorder %s29, 7
      %p378 = por %p376, %p377
      %p380 = scmp.ne.s32.totalorder %s363, %s379
      %p381 = scmp.eq.s32.totalorder %s29, 0
      %p382 = por %p380, %p381
      %p383 = scmp.le.s32.totalorder 1, %s23
      %p384 = scmp.lt.s32.totalorder %s23, 9
      %p385 = pnand %p383, %p384
      %p386 = pneg %p385
      // Predicated region
      $region9: #{tpu_custom_call.1} parent=5 // pred_check
        _
      $region10: #{tpu_custom_call.1} parent=5 // pred_check_branch
        %388 = sbr.rel (%p385) target = $region12
      $region11: #{tpu_custom_call.1} parent=5 // pred_region
        %s389 = ssub.s32 %s23, 1
        // Predicated region
        $region13: #{tpu_custom_call.1} parent=11 // pred_check
          %p390 = pneg %p82
        $region14: #{tpu_custom_call.1} parent=11 // pred_check_branch
          %392 = sbr.rel (%p390) target = $region16
        $region15: #{tpu_custom_call.1} parent=11 // pred_region
          _
        $region16: #{tpu_custom_call.1} parent=11 // pred_fallthru
          _
        // Predicated region
        $region17: #{tpu_custom_call.1} parent=11 // pred_check
          %p393 = pneg %p181
        $region18: #{tpu_custom_call.1} parent=11 // pred_check_branch
          %395 = sbr.rel (%p393) target = $region20
        $region19: #{tpu_custom_call.1} parent=11 // pred_region
          _
        $region20: #{tpu_custom_call.1} parent=11 // pred_fallthru
          _
        // Predicated region
        $region21: #{tpu_custom_call.1} parent=11 // pred_check
          %p396 = pneg %p202
        $region22: #{tpu_custom_call.1} parent=11 // pred_check_branch
          %398 = sbr.rel (%p396) target = $region24
        $region23: #{tpu_custom_call.1} parent=11 // pred_region
          _
        $region24: #{tpu_custom_call.1} parent=11 // pred_fallthru
          _
        // Predicated region
        $region25: #{tpu_custom_call.1} parent=11 // pred_check
          %p399 = pneg %p223
        $region26: #{tpu_custom_call.1} parent=11 // pred_check_branch
          %401 = sbr.rel (%p399) target = $region28
        $region27: #{tpu_custom_call.1} parent=11 // pred_region
          _
        $region28: #{tpu_custom_call.1} parent=11 // pred_fallthru
          _
        // Predicated region
        $region29: #{tpu_custom_call.1} parent=11 // pred_check
          %p402 = pneg %p244
        $region30: #{tpu_custom_call.1} parent=11 // pred_check_branch
          %404 = sbr.rel (%p402) target = $region32
        $region31: #{tpu_custom_call.1} parent=11 // pred_region
          _
        $region32: #{tpu_custom_call.1} parent=11 // pred_fallthru
          _
        // Predicated region
        $region33: #{tpu_custom_call.1} parent=11 // pred_check
          %p405 = pneg %p265
        $region34: #{tpu_custom_call.1} parent=11 // pred_check_branch
          %407 = sbr.rel (%p405) target = $region36
        $region35: #{tpu_custom_call.1} parent=11 // pred_region
          _
        $region36: #{tpu_custom_call.1} parent=11 // pred_fallthru
          _
        // Predicated region
        $region37: #{tpu_custom_call.1} parent=11 // pred_check
          %p408 = pneg %p286
        $region38: #{tpu_custom_call.1} parent=11 // pred_check_branch
          %410 = sbr.rel (%p408) target = $region40
        $region39: #{tpu_custom_call.1} parent=11 // pred_region
          _
        $region40: #{tpu_custom_call.1} parent=11 // pred_fallthru
          _
        // Predicated region
        $region41: #{tpu_custom_call.1} parent=11 // pred_check
          %p411 = pneg %p307
        $region42: #{tpu_custom_call.1} parent=11 // pred_check_branch
          %413 = sbr.rel (%p411) target = $region44
        $region43: #{tpu_custom_call.1} parent=11 // pred_region
          _
        $region44: #{tpu_custom_call.1} parent=11 // pred_fallthru
          _
        // Predicated region
        $region45: #{tpu_custom_call.1} parent=11 // pred_check
          %p414 = pneg %p328
        $region46: #{tpu_custom_call.1} parent=11 // pred_check_branch
          %416 = sbr.rel (%p414) target = $region48
        $region47: #{tpu_custom_call.1} parent=11 // pred_region
          _
        $region48: #{tpu_custom_call.1} parent=11 // pred_fallthru
          _
        // Predicated region
        $region49: #{tpu_custom_call.1} parent=11 // pred_check
          %p417 = pneg %p349
        $region50: #{tpu_custom_call.1} parent=11 // pred_check_branch
          %419 = sbr.rel (%p417) target = $region52
        $region51: #{tpu_custom_call.1} parent=11 // pred_region
          _
        $region52: #{tpu_custom_call.1} parent=11 // pred_fallthru
          _
      $region12: #{tpu_custom_call.1} parent=5 // pred_fallthru
        _
      %p420 = scmp.lt.s32.totalorder %s23, 8
      // Predicated region
      $region53: #{tpu_custom_call.1} parent=5 // pred_check
        %p421 = pneg %p420
      $region54: #{tpu_custom_call.1} parent=5 // pred_check_branch
        %423 = sbr.rel (%p421) target = $region56
      $region55: #{tpu_custom_call.1} parent=5 // pred_region
        // Predicated region
        $region57: #{tpu_custom_call.1} parent=55 // pred_check
          %p424 = pneg %p55
        $region58: #{tpu_custom_call.1} parent=55 // pred_check_branch
          %426 = sbr.rel (%p424) target = $region60
        $region59: #{tpu_custom_call.1} parent=55 // pred_region
          %p427 = scmp.lt.s32.totalorder %s30, 1
          %s428 = scalar_select %p427, %s30, 1
          %s429 = smul.addr %s428, 8
          %s430 = scalar_lea.vmem %s0, %s429
        $region60: #{tpu_custom_call.1} parent=55 // pred_fallthru
          _
        // Predicated region
        $region61: #{tpu_custom_call.1} parent=55 // pred_check
          %p431 = pneg %p102
        $region62: #{tpu_custom_call.1} parent=55 // pred_check_branch
          %433 = sbr.rel (%p431) target = $region64
        $region63: #{tpu_custom_call.1} parent=55 // pred_region
          %p434 = scmp.lt.s32.totalorder %s31, 3
          %s435 = scalar_select %p434, %s31, 3
          %s436 = smul.addr %s435, 4
          %s437 = smul.addr %s436, 4
          %s438 = scalar_lea.vmem %s2, %s437
        $region64: #{tpu_custom_call.1} parent=55 // pred_fallthru
          _
        // Predicated region
        $region65: #{tpu_custom_call.1} parent=55 // pred_check
          %p439 = pneg %p128
        $region66: #{tpu_custom_call.1} parent=55 // pred_check_branch
          %441 = sbr.rel (%p439) target = $region68
        $region67: #{tpu_custom_call.1} parent=55 // pred_region
          %p442 = scmp.lt.s32.totalorder %s31, 3
          %s443 = scalar_select %p442, %s31, 3
          %s444 = scalar_lea.vmem %s3, %s443
        $region68: #{tpu_custom_call.1} parent=55 // pred_fallthru
          _
        // Predicated region
        $region69: #{tpu_custom_call.1} parent=55 // pred_check
          %p445 = pneg %p154
        $region70: #{tpu_custom_call.1} parent=55 // pred_check_branch
          %447 = sbr.rel (%p445) target = $region72
        $region71: #{tpu_custom_call.1} parent=55 // pred_region
          %p448 = scmp.lt.s32.totalorder %s31, 3
          %s449 = scalar_select %p448, %s31, 3
          %s450 = smul.addr %s449, 4
          %s451 = scalar_lea.vmem %s4, %s450
        $region72: #{tpu_custom_call.1} parent=55 // pred_fallthru
          _
      $region56: #{tpu_custom_call.1} parent=5 // pred_fallthru
        _
      %p452 = scmp.le.s32.totalorder 1, %s23
      %p453 = scmp.lt.s32.totalorder %s23, 9
      %p454 = pnand %p452, %p453
      %p455 = pneg %p454
      // Predicated region
      $region73: #{tpu_custom_call.1} parent=5 // pred_check
        _
      $region74: #{tpu_custom_call.1} parent=5 // pred_check_branch
        %457 = sbr.rel (%p454) target = $region76
      $region75: #{tpu_custom_call.1} parent=5 // pred_region
        %s458 = ssub.s32 %s23, 1
        %p459 = scmp.lt.s32.totalorder %s32, 1
        %s460 = scalar_select %p459, %s32, 1
        %s461 = smul.addr %s460, 8
        %s462 = scalar_lea.vmem %s0, %s461
        %p463 = pneg %p61
        %p464 = pneg %p58
        %p465 = pneg %p82
        %p466 = pneg %p79
        %p467 = scmp.lt.s32.totalorder %s33, 3
        %s468 = scalar_select %p467, %s33, 3
        %s469 = smul.addr %s468, 4
        %s470 = smul.addr %s469, 4
        %s471 = scalar_lea.vmem %s2, %s470
        %p472 = pneg %p108
        %p473 = pneg %p105
        %p474 = scmp.lt.s32.totalorder %s33, 3
        %s475 = scalar_select %p474, %s33, 3
        %s476 = scalar_lea.vmem %s3, %s475
        %p477 = pneg %p134
        %p478 = pneg %p131
        %p479 = scmp.lt.s32.totalorder %s33, 3
        %s480 = scalar_select %p479, %s33, 3
        %s481 = smul.addr %s480, 4
        %s482 = scalar_lea.vmem %s4, %s481
        %p483 = pneg %p160
        %p484 = pneg %p157
        %p485 = pneg %p181
        %p486 = pneg %p178
        %p487 = pneg %p202
        %p488 = pneg %p199
        %p489 = pneg %p223
        %p490 = pneg %p220
        %p491 = pneg %p244
        %p492 = pneg %p241
        %p493 = pneg %p265
        %p494 = pneg %p262
        %p495 = pneg %p286
        %p496 = pneg %p283
        %p497 = pneg %p307
        %p498 = pneg %p304
        %p499 = pneg %p328
        %p500 = pneg %p325
        %p501 = pneg %p349
        %p502 = pneg %p346
        %p503 = pneg %p375
        %p504 = pneg %p372
        %s505 = sand.u32 %s362, 1
        %s506 = scalar_lea.sflag [#allocation4], %s505
        %s507 = sand.u32 %s362, 1
        %s508 = smul.addr %s507, 8
        %s509 = scalar_lea.vmem [#allocation3], %s508
        %p510 = scmp.lt.s32.totalorder %s32, 1
        %s511 = scalar_select %p510, %s32, 1
        %s512 = smul.addr %s511, 8
        %s513 = scalar_lea.vmem %s0, %s512
        %p514 = scmp.lt.s32.totalorder %s33, 3
        %s515 = scalar_select %p514, %s33, 3
        %s516 = smul.addr %s515, 4
        %s517 = smul.addr %s516, 4
        %s518 = scalar_lea.vmem %s2, %s517
        %p519 = scmp.lt.s32.totalorder %s33, 3
        %s520 = scalar_select %p519, %s33, 3
        %s521 = scalar_lea.vmem %s3, %s520
        %p522 = scmp.lt.s32.totalorder %s33, 3
        %s523 = scalar_select %p522, %s33, 3
        %s524 = smul.addr %s523, 4
        %s525 = scalar_lea.vmem %s4, %s524
        %v527 = vld [vmem:[%s513] sm:$0xff]
        %v528 = vpack.c.bf16 %v527, %v527
        %v529 = vld [vmem:[%s1] sm:$0xff]
        %v530 = vld [vmem:[%s518] sm:$0xf]
        %v531 = vld [vmem:[%s518 + $0x4] sm:$0xf]
        %v532 = vld [vmem:[%s518 + $0x8] sm:$0xf]
        %v533 = vld [vmem:[%s518 + $0xc] sm:$0xf]
        %v534 = vld [vmem:[%s521] sm:$0x1]
        %v536 = vperm.slane %v534, 0
        %v542 = vunpack.c.l.b16 %v530
        %v543 = vunpack.c.l.b16 %v531
        %v544 = vunpack.c.l.b16 %v532
        %v545 = vunpack.c.l.b16 %v533
        %v546 = vpack.c.b16 %v543, %v542
        %v547 = vpack.c.b16 %v545, %v544
        %vm550 = vcmask 261120
        %v552 = vsel %vm550, %v528, 0
        %554 = vmatpush.bf16.msra.mxu0 0
        %555 = vmatpush.bf16.msra.mxu0 0
        %556 = vmatpush.bf16.msra.mxu0 0
        %557 = vmatpush.bf16.msra.mxu0 0
        %558 = vmatpush.bf16.msra.mxu0 0
        %559 = vmatpush.bf16.msra.mxu0 0
        %560 = vmatpush.bf16.msra.mxu0 %v547
        %561 = vmatpush.bf16.msra.mxu0 %v546
        %562 = vmatmul.bf16.gmra.mxu0 %v552
        %v563 = vpop.f32.mrf.mxu0
        %v564 = vadd.f32 %v536, %v563
        %v565 = vpop.f32.mrf.mxu0
        %566 = vdwg.mxu0
        %v567 = vmul.f32 %v564, 0.35355338
        %v568 = vpack.c.bf16 %v567, %v567
        %v569 = vpack.c.bf16 %v564, %v564
        %571 = vrot.lane.b32.xlu0 %v569, 120
        %v572 = vpop.permute.xlu0 %571
        %vm573 = vcmask 64512
        %v575 = vsel %vm573, %v568, 0
        %v578 = vsel %vm573, %v572, 0
        %580 = vmatpush.bf16.xpose.msra.mxu0 0
        %581 = vmatpush.bf16.xpose.msra.mxu0 0
        %582 = vmatpush.bf16.xpose.msra.mxu0 0
        %583 = vmatpush.bf16.xpose.msra.mxu0 0
        %584 = vmatpush.bf16.xpose.msra.mxu0 0
        %585 = vmatpush.bf16.xpose.msra.mxu0 0
        %586 = vmatpush.bf16.xpose.msra.mxu0 0
        %587 = vmatpush.bf16.xpose.msra.mxu0 %v578
        %588 = vmatmul.bf16.gmra.mxu0 %v575
        %v589 = vpop.f32.mrf.mxu0
        %v590 = vadd.f32 %v529, %v589
        %v591 = vpop.f32.mrf.mxu0
        %592 = vdwg.mxu0
        %v593 = vsel %vm573, %v590, -inf
        %594 = vmax.xlane.f32.xlu0 %v593
        %v595 = vpop.xlane.xlu0 %594
        %v596 = vsub.f32 %v590, %v595
        %v597 = vmul.f32 %v596, 1.442695
        %v598 = vpow.pop %v597
        %v599 = vsel %vm573, %v598, 0.0
        %600 = vadd.xlane.f32.xlu0 %v599
        %v601 = vpop.xlane.xlu0 %600
        %v602 = vrcp.pop %v601
        %v603 = vmul.f32 %v598, %v602
        %v604 = vpack.c.bf16 %v603, %v603
        %605 = vrot.lane.b32.xlu0 %v569, 112
        %v606 = vpop.permute.xlu0 %605
        %v608 = vsel %vm573, %v604, 0
        %vm610 = vcmask 1043456
        %v612 = vsel %vm610, %v606, 0
        %614 = vmatpush.bf16.msra.mxu0 0
        %615 = vmatpush.bf16.msra.mxu0 0
        %616 = vmatpush.bf16.msra.mxu0 0
        %617 = vmatpush.bf16.msra.mxu0 0
        %618 = vmatpush.bf16.msra.mxu0 0
        %619 = vmatpush.bf16.msra.mxu0 0
        %620 = vmatpush.bf16.msra.mxu0 0
        %621 = vmatpush.bf16.msra.mxu0 %v612
        %622 = vmatmul.bf16.gmra.mxu0 %v608
        %v623 = vpop.f32.mrf.mxu0
        %v624 = vadd.f32 0.0, %v623
        %v625 = vpop.f32.mrf.mxu0
        %626 = vdwg.mxu0
        %p627 = scmp.eq.s32.totalorder %s33, 0
        // Predicated region
        $region77: #{tpu_custom_call.1} parent=75 // pred_check
          %p628 = pneg %p627
        $region78: #{tpu_custom_call.1} parent=75 // pred_check_branch
          %630 = sbr.rel (%p628) target = $region80
        $region79: #{tpu_custom_call.1} parent=75 // pred_region
          %631 = vst.msk [vmem:[#allocation2] sm:$0xff] %vm550, 0.0
        $region80: #{tpu_custom_call.1} parent=75 // pred_fallthru
          _
        %v632 = vld [vmem:[#allocation2] sm:$0xff]
        %v633 = vpack.c.bf16 %v624, %v624
        %v634 = vld [vmem:[%s525] sm:$0xf]
        %v636 = vsel %vm573, %v633, 0
        %v639 = vsel %vm610, %v634, 0
        %641 = vmatpush.bf16.msra.mxu0 0
        %642 = vmatpush.bf16.msra.mxu0 0
        %643 = vmatpush.bf16.msra.mxu0 0
        %644 = vmatpush.bf16.msra.mxu0 0
        %645 = vmatpush.bf16.msra.mxu0 0
        %646 = vmatpush.bf16.msra.mxu0 0
        %647 = vmatpush.bf16.msra.mxu0 0
        %648 = vmatpush.bf16.msra.mxu0 %v639
        %649 = vmatmul.bf16.gmra.mxu0 %v636
        %v650 = vpop.f32.mrf.mxu0
        %v651 = vadd.f32 0.0, %v650
        %v652 = vpop.f32.mrf.mxu0
        %653 = vdwg.mxu0
        %v654 = vadd.f32 %v632, %v651
        %655 = vst.msk [vmem:[#allocation2] sm:$0xff] %vm550, %v654
        %p656 = scmp.eq.s32.totalorder %s33, 3
        // Predicated region
        $region81: #{tpu_custom_call.1} parent=75 // pred_check
          %p657 = pneg %p656
        $region82: #{tpu_custom_call.1} parent=75 // pred_check_branch
          %659 = sbr.rel (%p657) target = $region84
        $region83: #{tpu_custom_call.1} parent=75 // pred_region
          %v660 = vld [vmem:[%s513] sm:$0xff]
          %v661 = vld [vmem:[#allocation2] sm:$0xff]
          %v662 = vld [vmem:[%s5] sm:$0x1]
          %v664 = vperm.slane %v662, 0
          %v666 = vadd.f32 %v661, %v664
          %v667 = vadd.f32 %v660, %v666
          %v668 = vld [vmem:[%s6] sm:$0x1]
          %v669 = vld [vmem:[%s7] sm:$0x1]
          %v670 = vsel %vm550, %v667, 0.0
          %671 = vadd.xlane.f32.xlu0 %v670
          %v672 = vpop.xlane.xlu0 %671
          %v673 = vrcp.pop 32.0
          %v674 = vmul.f32 32.0, %v673
          %v675 = vsub.f32 1.0, %v674
          %v676 = vmul.f32 %v673, %v675
          %v677 = vadd.f32 %v673, %v676
          %vm678 = vweird.f32 %v673
          %v679 = vsel %vm678, %v673, %v677
          %v680 = vmul.f32 %v672, %v679
          %v681 = vsub.f32 %v667, %v680
          %v682 = vmul.f32 %v681, %v681
          %v683 = vsel %vm550, %v682, 0.0
          %684 = vadd.xlane.f32.xlu0 %v683
          %v685 = vpop.xlane.xlu0 %684
          %v686 = vmul.f32 %v685, %v679
          %v687 = vadd.f32 %v686, 1e-05
          %v688 = vrsqrt.pop %v687
          %v689 = vmul.f32 %v688, %v687
          %v690 = vmul.f32 %v689, %v688
          %v691 = vmul.f32 0.5, %v690
          %v692 = vsub.f32 1.5, %v691
          %v693 = vmul.f32 %v688, %v692
          %vm694 = vweird.f32 %v687
          %vm695 = vweird.f32 %v688
          %vm696 = vmor %vm694, %vm695
          %v697 = vsel %vm696, %v688, %v693
          %v698 = vmul.f32 %v681, %v697
          %v700 = vperm.slane %v668, 0
          %v702 = vmul.f32 %v698, %v700
          %v704 = vperm.slane %v669, 0
          %v706 = vadd.f32 %v702, %v704
          %v707 = vpack.c.bf16 %v706, %v706
          %v708 = vld [vmem:[%s8] sm:$0xf]
          %v709 = vld [vmem:[%s8 + $0x4] sm:$0xf]
          %v710 = vld [vmem:[%s8 + $0x8] sm:$0xf]
          %v711 = vld [vmem:[%s8 + $0xc] sm:$0xf]
          %v712 = vld [vmem:[%s9] sm:$0x1]
          %v714 = vperm.slane %v712, 0
          %v720 = vunpack.c.l.b16 %v708
          %v721 = vunpack.c.l.b16 %v709
          %v722 = vunpack.c.l.b16 %v710
          %v723 = vunpack.c.l.b16 %v711
          %v724 = vpack.c.b16 %v721, %v720
          %v725 = vpack.c.b16 %v723, %v722
          %v729 = vsel %vm550, %v707, 0
          %731 = vmatpush.bf16.msra.mxu0 0
          %732 = vmatpush.bf16.msra.mxu0 0
          %733 = vmatpush.bf16.msra.mxu0 0
          %734 = vmatpush.bf16.msra.mxu0 0
          %735 = vmatpush.bf16.msra.mxu0 0
          %736 = vmatpush.bf16.msra.mxu0 0
          %737 = vmatpush.bf16.msra.mxu0 %v725
          %738 = vmatpush.bf16.msra.mxu0 %v724
          %739 = vmatmul.bf16.gmra.mxu0 %v729
          %v740 = vpop.f32.mrf.mxu0
          %v741 = vadd.f32 %v714, %v740
          %v742 = vpop.f32.mrf.mxu0
          %743 = vdwg.mxu0
          %v744 = vmax.f32 %v741, 0.0
          %v745 = vpack.c.bf16 %v744, %v744
          %v746 = vld [vmem:[%s10] sm:$0xf]
          %v747 = vld [vmem:[%s10 + $0x4] sm:$0xf]
          %v748 = vld [vmem:[%s10 + $0x8] sm:$0xf]
          %v749 = vld [vmem:[%s10 + $0xc] sm:$0xf]
          %v750 = vld [vmem:[%s10 + $0x10] sm:$0xf]
          %v751 = vld [vmem:[%s10 + $0x14] sm:$0xf]
          %v752 = vld [vmem:[%s10 + $0x18] sm:$0xf]
          %v753 = vld [vmem:[%s10 + $0x1c] sm:$0xf]
          %v754 = vld [vmem:[%s11] sm:$0x1]
          %v756 = vperm.slane %v754, 0
          %v766 = vunpack.c.l.b16 %v746
          %v767 = vunpack.c.l.b16 %v747
          %v768 = vunpack.c.l.b16 %v748
          %v769 = vunpack.c.l.b16 %v749
          %v770 = vunpack.c.l.b16 %v750
          %v771 = vunpack.c.l.b16 %v751
          %v772 = vunpack.c.l.b16 %v752
          %v773 = vunpack.c.l.b16 %v753
          %v774 = vpack.c.b16 %v767, %v766
          %v775 = vpack.c.b16 %v769, %v768
          %v776 = vpack.c.b16 %v771, %v770
          %v777 = vpack.c.b16 %v773, %v772
          %vm782 = vcmask 523264
          %v784 = vsel %vm782, %v745, 0
          %786 = vmatpush.bf16.msra.mxu0 0
          %787 = vmatpush.bf16.msra.mxu0 0
          %788 = vmatpush.bf16.msra.mxu0 0
          %789 = vmatpush.bf16.msra.mxu0 0
          %790 = vmatpush.bf16.msra.mxu0 %v777
          %791 = vmatpush.bf16.msra.mxu0 %v776
          %792 = vmatpush.bf16.msra.mxu0 %v775
          %793 = vmatpush.bf16.msra.mxu0 %v774
          %794 = vmatmul.bf16.gmra.mxu0 %v784
          %v795 = vpop.f32.mrf.mxu0
          %v796 = vadd.f32 %v756, %v795
          %v797 = vpop.f32.mrf.mxu0
          %798 = vdwg.mxu0
          %v799 = vadd.f32 %v706, %v796
          %v800 = vld [vmem:[%s12] sm:$0x1]
          %v801 = vld [vmem:[%s13] sm:$0x1]
          %v802 = vsel %vm550, %v799, 0.0
          %803 = vadd.xlane.f32.xlu0 %v802
          %v804 = vpop.xlane.xlu0 %803
          %v805 = vmul.f32 %v804, %v679
          %v806 = vsub.f32 %v799, %v805
          %v807 = vmul.f32 %v806, %v806
          %v808 = vsel %vm550, %v807, 0.0
          %809 = vadd.xlane.f32.xlu0 %v808
          %v810 = vpop.xlane.xlu0 %809
          %v811 = vmul.f32 %v810, %v679
          %v812 = vadd.f32 %v811, 1e-05
          %v813 = vrsqrt.pop %v812
          %v814 = vmul.f32 %v813, %v812
          %v815 = vmul.f32 %v814, %v813
          %v816 = vmul.f32 0.5, %v815
          %v817 = vsub.f32 1.5, %v816
          %v818 = vmul.f32 %v813, %v817
          %vm819 = vweird.f32 %v812
          %vm820 = vweird.f32 %v813
          %vm821 = vmor %vm819, %vm820
          %v822 = vsel %vm821, %v813, %v818
          %v823 = vmul.f32 %v806, %v822
          %v825 = vperm.slane %v800, 0
          %v827 = vmul.f32 %v823, %v825
          %v829 = vperm.slane %v801, 0
          %v831 = vadd.f32 %v827, %v829
          %832 = vst.msk [vmem:[%s509] sm:$0xff] %vm550, %v831
        $region84: #{tpu_custom_call.1} parent=75 // pred_fallthru
          _
        %s833 = sand.u32 %s362, 1
        %s834 = scalar_lea.sflag [#allocation4], %s833
        %s835 = sand.u32 %s362, 1
        %s836 = smul.addr %s835, 8
        %s837 = scalar_lea.vmem [#allocation3], %s836
        // Predicated region
        $region85: #{tpu_custom_call.1} parent=75 // pred_check
          %p838 = pneg %p372
        $region86: #{tpu_custom_call.1} parent=75 // pred_check_branch
          %840 = sbr.rel (%p838) target = $region88
        $region87: #{tpu_custom_call.1} parent=75 // pred_region
          %842 = vsyncadd %s834, 0
          %s843 = smul.addr %s32, 8
          %s844 = scalar_lea.hbm %s14, %s843
          %s846 = sshll.u32 %s837, 4
          %s847 = int_to_ptr.vmem [resolvable:$true] %s846
          %s848 = sshll.u32 %s844, 4
          %s849 = int_to_ptr.hbm [resolvable:$true] %s848
          %851 = dma.vmem_to_hbm [thread:$0]  %s847, 128, %s849, %s834
        $region88: #{tpu_custom_call.1} parent=75 // pred_fallthru
          _
      $region76: #{tpu_custom_call.1} parent=5 // pred_fallthru
        _
      %p852 = scmp.le.s32.totalorder 2, %s23
      // Predicated region
      $region89: #{tpu_custom_call.1} parent=5 // pred_check
        %p853 = pneg %p852
      $region90: #{tpu_custom_call.1} parent=5 // pred_check_branch
        %855 = sbr.rel (%p853) target = $region92
      $region91: #{tpu_custom_call.1} parent=5 // pred_region
        %s856 = ssub.s32 %s23, 2
        // Predicated region
        $region93: #{tpu_custom_call.1} parent=91 // pred_check
          %p857 = pneg %p378
        $region94: #{tpu_custom_call.1} parent=91 // pred_check_branch
          %859 = sbr.rel (%p857) target = $region96
        $region95: #{tpu_custom_call.1} parent=91 // pred_region
          %s860 = sand.u32 %s363, 1
          %s861 = scalar_lea.sflag [#allocation4], %s860
          %s862 = sand.u32 %s363, 1
          %s863 = smul.addr %s862, 8
          %s864 = scalar_lea.vmem [#allocation3], %s863
          %866 = dma.done %s861, 128
        $region96: #{tpu_custom_call.1} parent=91 // pred_fallthru
          _
      $region92: #{tpu_custom_call.1} parent=5 // pred_fallthru
        _
    $region6: #{tpu_custom_call.1} parent=1 // loop_footer
      %s27 = sadd.s32 1, %s23
    $region7: #{tpu_custom_call.1} parent=1 // loop_footer_branch
      %22 = sbr.rel target = $region3
    $region8: #{tpu_custom_call.1} parent=1 // loop_exit
      _
    %867 = vsyncpa [#allocation4], 1
    %s868 = scalar_lea.sflag [#allocation4], 1
    %869 = vsyncpa %s868, 1

</llo_original>
